<compile_context>
chip_gen: v6e
topology: v6e:2x2x1
jax: 0.10.0
libtpu: 0.0.40
codegen_flags: <defaults>
</compile_context>

<pallas_src>
import numpy as np
import jax
import jax.numpy as jnp
from jax.experimental import pallas as pl
from jax.experimental.pallas import tpu as pltpu

ROWS, COLS = 20, 16  # vertical_indexes reshapes arange(T) to (20, 16) => T must be 320


def vertical_indexes(size: int, rng: np.random.RandomState):
    """Host-side index generation, identical to the PyTorch module (glue).

    Returns (forward, backward, group_perm) where group_perm is the permutation
    of the 20 row-groups that `forward` realizes.
    """
    assert size == ROWS * COLS, "vertical_indexes requires T == 320"
    forward = np.arange(size).reshape(ROWS, COLS)
    perm = np.arange(ROWS)
    rng.shuffle(perm)
    forward = forward[perm, :].reshape(-1)
    backward = np.argsort(forward)
    return forward, backward, perm


def _make_shuffle_kernel(n_groups: int, remain_T: int):
    """HBM->HBM group-gather kernel for one batch element per grid step."""

    def kernel(gidx_ref, x_hbm, o_hbm, sems):
        # gidx_ref : (B * n_groups,) int32 in SMEM (scalar prefetch)
        # x_hbm    : (T, B, C) raw HBM ref (memory_space=pl.ANY)
        # o_hbm    : (remain_T, B, C) raw HBM ref (memory_space=pl.ANY)
        # sems     : (n_groups,) DMA semaphores
        b = pl.program_id(0)
        copies = []
        # Static unroll over the ~10 kept groups: issue all DMAs first so they
        # are all in flight concurrently, then wait on all of them.
        for g in range(n_groups):
            rows = min(COLS, remain_T - g * COLS)  # last group may be ragged (15)
            src_row = pl.multiple_of(gidx_ref[b * n_groups + g] * COLS, COLS)
            cp = pltpu.make_async_copy(
                x_hbm.at[pl.ds(src_row, rows), pl.ds(b, 1), :],
                o_hbm.at[pl.ds(g * COLS, rows), pl.ds(b, 1), :],
                sems.at[g],
            )
            cp.start()
            copies.append(cp)
        for cp in copies:
            cp.wait()

    return kernel


def patch_shuffle_vertical(patches: jnp.ndarray, ratio: float = 0.5, seed: int = 0):
    """patches: (T, B, C). Returns (shuffled[:remain_T], forward_idx, backward_idx)."""
    T, B, C = patches.shape
    assert T == ROWS * COLS, "PatchShuffleVertical requires T == 320"
    remain_T = int(T * (1 - ratio)) - 1           # module's own (-1) convention
    if remain_T <= 0:
        raise ValueError(f"ratio={ratio} gives remain_T={remain_T} <= 0")
    n_groups = pl.cdiv(remain_T, COLS)            # kept output groups (last one ragged)

    # Deterministic synthetic index generation (the module uses np.random internally).
    rng = np.random.RandomState(seed)
    fwd_cols, bwd_cols, perms = [], [], []
    for _ in range(B):
        f, bk, p = vertical_indexes(T, rng)
        fwd_cols.append(f)
        bwd_cols.append(bk)
        perms.append(p)
    # NOTE: returned as int32 (PyTorch module returns int64); fine for T == 320.
    forward_np = np.stack(fwd_cols, axis=-1).astype(np.int32)    # (T, B)
    backward_np = np.stack(bwd_cols, axis=-1).astype(np.int32)   # (T, B)

    # Per-batch source-group indices for the kept output groups only:
    # gidx_flat[b * n_groups + g] = source group feeding output rows
    # [g*COLS, (g+1)*COLS) of batch b.
    gidx_np = np.stack(perms, axis=0)[:, :n_groups].astype(np.int32)  # (B, n_groups)
    gidx_flat = jnp.asarray(gidx_np.reshape(-1))                       # (B * n_groups,)

    out = pl.pallas_call(
        _make_shuffle_kernel(n_groups, remain_T),
        out_shape=jax.ShapeDtypeStruct((remain_T, B, C), patches.dtype),
        grid_spec=pltpu.PrefetchScalarGridSpec(
            num_scalar_prefetch=1,
            grid=(B,),
            in_specs=[pl.BlockSpec(memory_space=pl.ANY)],    # raw HBM, no auto-DMA
            out_specs=pl.BlockSpec(memory_space=pl.ANY),     # written only via DMA
            scratch_shapes=[pltpu.SemaphoreType.DMA((n_groups,))],
        ),
        compiler_params=pltpu.CompilerParams(
            dimension_semantics=("parallel",),   # per-batch steps are independent
            has_side_effects=True,               # output produced purely via DMA
        ),
    )(gidx_flat, patches)

    return out, jnp.asarray(forward_np), jnp.asarray(backward_np)


if __name__ == "__main__":
    # T is fixed at 320 by the module's vertical_indexes; keep B and C small.
    T, B, C = ROWS * COLS, 2, 128
    key = jax.random.PRNGKey(0)
    patches = jax.random.normal(key, (T, B, C), dtype=jnp.float32)

    def _check(ratio, seed):
        shuffled, fwd, bwd = patch_shuffle_vertical(patches, ratio=ratio, seed=seed)
        shuffled = jax.block_until_ready(shuffled)
        remain_T = int(T * (1 - ratio)) - 1
        # Pure-JAX reference for the gather hot path.
        ref = jnp.take_along_axis(
            patches, fwd[:, :, None].astype(jnp.int32), axis=0
        )[:remain_T]
        assert shuffled.shape == (remain_T, B, C)
        assert fwd.shape == (T, B) and bwd.shape == (T, B)
        np.testing.assert_allclose(np.asarray(shuffled), np.asarray(ref), rtol=0, atol=0)
        # backward must invert forward
        np.testing.assert_array_equal(
            np.take_along_axis(np.asarray(fwd), np.asarray(bwd), axis=0),
            np.arange(T)[:, None].repeat(B, axis=1),
        )

    _check(0.5, 0)    # remain_T = 159: ragged last group (15 rows)
    _check(0.495, 1)  # remain_T = 160: exact multiple of 16 (no ragged tail)
    print("KERNEL_OK")
</pallas_src>

<mosaic_0001>
module attributes {stable_mosaic.version = 11 : i64} {
  func.func @kernel(%arg0: i32, %arg1: memref<20xi32, #tpu.memory_space<smem>>, %arg2: memref<320x2x128xf32, #tpu.memory_space<any>>, %arg3: memref<159x2x128xf32, #tpu.memory_space<any>>, %arg4: memref<10x!tpu.dma_semaphore, #tpu.memory_space<semaphore_mem>>) attributes {dimension_semantics = [#tpu.dimension_semantics<parallel>], iteration_bounds = array<i64: 2>, scalar_prefetch = 1 : i64, scratch_operands = 1 : i64, tpu.core_type = #tpu.core_type<tc>, window_params = [{}, {}]} {
    %c10_i32 = arith.constant 10 : i32
    %0 = arith.muli %arg0, %c10_i32 : i32
    %c0_i32 = arith.constant 0 : i32
    %1 = arith.addi %0, %c0_i32 : i32
    %2 = arith.index_cast %1 : i32 to index
    %3 = memref.load %arg1[%2] : memref<20xi32, #tpu.memory_space<smem>>
    %c16_i32 = arith.constant 16 : i32
    %4 = arith.muli %3, %c16_i32 : i32
    %5 = tpu.assume_multiple %4, 16 : i32
    %c0_i32_0 = arith.constant 0 : i32
    %c0_i32_1 = arith.constant 0 : i32
    %6 = tpu.memref_slice %arg2[%5, %arg0, %c0_i32_1] : memref<320x2x128xf32, #tpu.memory_space<any>> -> memref<16x1x128xf32, #tpu.memory_space<any>>
    %c0_i32_2 = arith.constant 0 : i32
    %c0_i32_3 = arith.constant 0 : i32
    %7 = tpu.memref_slice %arg3[%c0_i32_2, %arg0, %c0_i32_3] : memref<159x2x128xf32, #tpu.memory_space<any>> -> memref<16x1x128xf32, #tpu.memory_space<any>>
    %8 = tpu.memref_slice %arg4[%c0_i32_0] : memref<10x!tpu.dma_semaphore, #tpu.memory_space<semaphore_mem>> -> memref<1x!tpu.dma_semaphore, #tpu.memory_space<semaphore_mem>>
    %9 = tpu.memref_squeeze %8 : memref<1x!tpu.dma_semaphore, #tpu.memory_space<semaphore_mem>> -> memref<!tpu.dma_semaphore, #tpu.memory_space<semaphore_mem>>
    tpu.enqueue_dma source(%6 : memref<16x1x128xf32, #tpu.memory_space<any>>) target(%7 : memref<16x1x128xf32, #tpu.memory_space<any>>) target_semaphore(%9 : memref<!tpu.dma_semaphore, #tpu.memory_space<semaphore_mem>>)
    %c10_i32_4 = arith.constant 10 : i32
    %10 = arith.muli %arg0, %c10_i32_4 : i32
    %c1_i32 = arith.constant 1 : i32
    %11 = arith.addi %10, %c1_i32 : i32
    %12 = arith.index_cast %11 : i32 to index
    %13 = memref.load %arg1[%12] : memref<20xi32, #tpu.memory_space<smem>>
    %c16_i32_5 = arith.constant 16 : i32
    %14 = arith.muli %13, %c16_i32_5 : i32
    %15 = tpu.assume_multiple %14, 16 : i32
    %c1_i32_6 = arith.constant 1 : i32
    %c0_i32_7 = arith.constant 0 : i32
    %16 = tpu.memref_slice %arg2[%15, %arg0, %c0_i32_7] : memref<320x2x128xf32, #tpu.memory_space<any>> -> memref<16x1x128xf32, #tpu.memory_space<any>>
    %c16_i32_8 = arith.constant 16 : i32
    %c0_i32_9 = arith.constant 0 : i32
    %17 = tpu.memref_slice %arg3[%c16_i32_8, %arg0, %c0_i32_9] : memref<159x2x128xf32, #tpu.memory_space<any>> -> memref<16x1x128xf32, #tpu.memory_space<any>>
    %18 = tpu.memref_slice %arg4[%c1_i32_6] : memref<10x!tpu.dma_semaphore, #tpu.memory_space<semaphore_mem>> -> memref<1x!tpu.dma_semaphore, #tpu.memory_space<semaphore_mem>>
    %19 = tpu.memref_squeeze %18 : memref<1x!tpu.dma_semaphore, #tpu.memory_space<semaphore_mem>> -> memref<!tpu.dma_semaphore, #tpu.memory_space<semaphore_mem>>
    tpu.enqueue_dma source(%16 : memref<16x1x128xf32, #tpu.memory_space<any>>) target(%17 : memref<16x1x128xf32, #tpu.memory_space<any>>) target_semaphore(%19 : memref<!tpu.dma_semaphore, #tpu.memory_space<semaphore_mem>>)
    %c10_i32_10 = arith.constant 10 : i32
    %20 = arith.muli %arg0, %c10_i32_10 : i32
    %c2_i32 = arith.constant 2 : i32
    %21 = arith.addi %20, %c2_i32 : i32
    %22 = arith.index_cast %21 : i32 to index
    %23 = memref.load %arg1[%22] : memref<20xi32, #tpu.memory_space<smem>>
    %c16_i32_11 = arith.constant 16 : i32
    %24 = arith.muli %23, %c16_i32_11 : i32
    %25 = tpu.assume_multiple %24, 16 : i32
    %c2_i32_12 = arith.constant 2 : i32
    %c0_i32_13 = arith.constant 0 : i32
    %26 = tpu.memref_slice %arg2[%25, %arg0, %c0_i32_13] : memref<320x2x128xf32, #tpu.memory_space<any>> -> memref<16x1x128xf32, #tpu.memory_space<any>>
    %c32_i32 = arith.constant 32 : i32
    %c0_i32_14 = arith.constant 0 : i32
    %27 = tpu.memref_slice %arg3[%c32_i32, %arg0, %c0_i32_14] : memref<159x2x128xf32, #tpu.memory_space<any>> -> memref<16x1x128xf32, #tpu.memory_space<any>>
    %28 = tpu.memref_slice %arg4[%c2_i32_12] : memref<10x!tpu.dma_semaphore, #tpu.memory_space<semaphore_mem>> -> memref<1x!tpu.dma_semaphore, #tpu.memory_space<semaphore_mem>>
    %29 = tpu.memref_squeeze %28 : memref<1x!tpu.dma_semaphore, #tpu.memory_space<semaphore_mem>> -> memref<!tpu.dma_semaphore, #tpu.memory_space<semaphore_mem>>
    tpu.enqueue_dma source(%26 : memref<16x1x128xf32, #tpu.memory_space<any>>) target(%27 : memref<16x1x128xf32, #tpu.memory_space<any>>) target_semaphore(%29 : memref<!tpu.dma_semaphore, #tpu.memory_space<semaphore_mem>>)
    %c10_i32_15 = arith.constant 10 : i32
    %30 = arith.muli %arg0, %c10_i32_15 : i32
    %c3_i32 = arith.constant 3 : i32
    %31 = arith.addi %30, %c3_i32 : i32
    %32 = arith.index_cast %31 : i32 to index
    %33 = memref.load %arg1[%32] : memref<20xi32, #tpu.memory_space<smem>>
    %c16_i32_16 = arith.constant 16 : i32
    %34 = arith.muli %33, %c16_i32_16 : i32
    %35 = tpu.assume_multiple %34, 16 : i32
    %c3_i32_17 = arith.constant 3 : i32
    %c0_i32_18 = arith.constant 0 : i32
    %36 = tpu.memref_slice %arg2[%35, %arg0, %c0_i32_18] : memref<320x2x128xf32, #tpu.memory_space<any>> -> memref<16x1x128xf32, #tpu.memory_space<any>>
    %c48_i32 = arith.constant 48 : i32
    %c0_i32_19 = arith.constant 0 : i32
    %37 = tpu.memref_slice %arg3[%c48_i32, %arg0, %c0_i32_19] : memref<159x2x128xf32, #tpu.memory_space<any>> -> memref<16x1x128xf32, #tpu.memory_space<any>>
    %38 = tpu.memref_slice %arg4[%c3_i32_17] : memref<10x!tpu.dma_semaphore, #tpu.memory_space<semaphore_mem>> -> memref<1x!tpu.dma_semaphore, #tpu.memory_space<semaphore_mem>>
    %39 = tpu.memref_squeeze %38 : memref<1x!tpu.dma_semaphore, #tpu.memory_space<semaphore_mem>> -> memref<!tpu.dma_semaphore, #tpu.memory_space<semaphore_mem>>
    tpu.enqueue_dma source(%36 : memref<16x1x128xf32, #tpu.memory_space<any>>) target(%37 : memref<16x1x128xf32, #tpu.memory_space<any>>) target_semaphore(%39 : memref<!tpu.dma_semaphore, #tpu.memory_space<semaphore_mem>>)
    %c10_i32_20 = arith.constant 10 : i32
    %40 = arith.muli %arg0, %c10_i32_20 : i32
    %c4_i32 = arith.constant 4 : i32
    %41 = arith.addi %40, %c4_i32 : i32
    %42 = arith.index_cast %41 : i32 to index
    %43 = memref.load %arg1[%42] : memref<20xi32, #tpu.memory_space<smem>>
    %c16_i32_21 = arith.constant 16 : i32
    %44 = arith.muli %43, %c16_i32_21 : i32
    %45 = tpu.assume_multiple %44, 16 : i32
    %c4_i32_22 = arith.constant 4 : i32
    %c0_i32_23 = arith.constant 0 : i32
    %46 = tpu.memref_slice %arg2[%45, %arg0, %c0_i32_23] : memref<320x2x128xf32, #tpu.memory_space<any>> -> memref<16x1x128xf32, #tpu.memory_space<any>>
    %c64_i32 = arith.constant 64 : i32
    %c0_i32_24 = arith.constant 0 : i32
    %47 = tpu.memref_slice %arg3[%c64_i32, %arg0, %c0_i32_24] : memref<159x2x128xf32, #tpu.memory_space<any>> -> memref<16x1x128xf32, #tpu.memory_space<any>>
    %48 = tpu.memref_slice %arg4[%c4_i32_22] : memref<10x!tpu.dma_semaphore, #tpu.memory_space<semaphore_mem>> -> memref<1x!tpu.dma_semaphore, #tpu.memory_space<semaphore_mem>>
    %49 = tpu.memref_squeeze %48 : memref<1x!tpu.dma_semaphore, #tpu.memory_space<semaphore_mem>> -> memref<!tpu.dma_semaphore, #tpu.memory_space<semaphore_mem>>
    tpu.enqueue_dma source(%46 : memref<16x1x128xf32, #tpu.memory_space<any>>) target(%47 : memref<16x1x128xf32, #tpu.memory_space<any>>) target_semaphore(%49 : memref<!tpu.dma_semaphore, #tpu.memory_space<semaphore_mem>>)
    %c10_i32_25 = arith.constant 10 : i32
    %50 = arith.muli %arg0, %c10_i32_25 : i32
    %c5_i32 = arith.constant 5 : i32
    %51 = arith.addi %50, %c5_i32 : i32
    %52 = arith.index_cast %51 : i32 to index
    %53 = memref.load %arg1[%52] : memref<20xi32, #tpu.memory_space<smem>>
    %c16_i32_26 = arith.constant 16 : i32
    %54 = arith.muli %53, %c16_i32_26 : i32
    %55 = tpu.assume_multiple %54, 16 : i32
    %c5_i32_27 = arith.constant 5 : i32
    %c0_i32_28 = arith.constant 0 : i32
    %56 = tpu.memref_slice %arg2[%55, %arg0, %c0_i32_28] : memref<320x2x128xf32, #tpu.memory_space<any>> -> memref<16x1x128xf32, #tpu.memory_space<any>>
    %c80_i32 = arith.constant 80 : i32
    %c0_i32_29 = arith.constant 0 : i32
    %57 = tpu.memref_slice %arg3[%c80_i32, %arg0, %c0_i32_29] : memref<159x2x128xf32, #tpu.memory_space<any>> -> memref<16x1x128xf32, #tpu.memory_space<any>>
    %58 = tpu.memref_slice %arg4[%c5_i32_27] : memref<10x!tpu.dma_semaphore, #tpu.memory_space<semaphore_mem>> -> memref<1x!tpu.dma_semaphore, #tpu.memory_space<semaphore_mem>>
    %59 = tpu.memref_squeeze %58 : memref<1x!tpu.dma_semaphore, #tpu.memory_space<semaphore_mem>> -> memref<!tpu.dma_semaphore, #tpu.memory_space<semaphore_mem>>
    tpu.enqueue_dma source(%56 : memref<16x1x128xf32, #tpu.memory_space<any>>) target(%57 : memref<16x1x128xf32, #tpu.memory_space<any>>) target_semaphore(%59 : memref<!tpu.dma_semaphore, #tpu.memory_space<semaphore_mem>>)
    %c10_i32_30 = arith.constant 10 : i32
    %60 = arith.muli %arg0, %c10_i32_30 : i32
    %c6_i32 = arith.constant 6 : i32
    %61 = arith.addi %60, %c6_i32 : i32
    %62 = arith.index_cast %61 : i32 to index
    %63 = memref.load %arg1[%62] : memref<20xi32, #tpu.memory_space<smem>>
    %c16_i32_31 = arith.constant 16 : i32
    %64 = arith.muli %63, %c16_i32_31 : i32
    %65 = tpu.assume_multiple %64, 16 : i32
    %c6_i32_32 = arith.constant 6 : i32
    %c0_i32_33 = arith.constant 0 : i32
    %66 = tpu.memref_slice %arg2[%65, %arg0, %c0_i32_33] : memref<320x2x128xf32, #tpu.memory_space<any>> -> memref<16x1x128xf32, #tpu.memory_space<any>>
    %c96_i32 = arith.constant 96 : i32
    %c0_i32_34 = arith.constant 0 : i32
    %67 = tpu.memref_slice %arg3[%c96_i32, %arg0, %c0_i32_34] : memref<159x2x128xf32, #tpu.memory_space<any>> -> memref<16x1x128xf32, #tpu.memory_space<any>>
    %68 = tpu.memref_slice %arg4[%c6_i32_32] : memref<10x!tpu.dma_semaphore, #tpu.memory_space<semaphore_mem>> -> memref<1x!tpu.dma_semaphore, #tpu.memory_space<semaphore_mem>>
    %69 = tpu.memref_squeeze %68 : memref<1x!tpu.dma_semaphore, #tpu.memory_space<semaphore_mem>> -> memref<!tpu.dma_semaphore, #tpu.memory_space<semaphore_mem>>
    tpu.enqueue_dma source(%66 : memref<16x1x128xf32, #tpu.memory_space<any>>) target(%67 : memref<16x1x128xf32, #tpu.memory_space<any>>) target_semaphore(%69 : memref<!tpu.dma_semaphore, #tpu.memory_space<semaphore_mem>>)
    %c10_i32_35 = arith.constant 10 : i32
    %70 = arith.muli %arg0, %c10_i32_35 : i32
    %c7_i32 = arith.constant 7 : i32
    %71 = arith.addi %70, %c7_i32 : i32
    %72 = arith.index_cast %71 : i32 to index
    %73 = memref.load %arg1[%72] : memref<20xi32, #tpu.memory_space<smem>>
    %c16_i32_36 = arith.constant 16 : i32
    %74 = arith.muli %73, %c16_i32_36 : i32
    %75 = tpu.assume_multiple %74, 16 : i32
    %c7_i32_37 = arith.constant 7 : i32
    %c0_i32_38 = arith.constant 0 : i32
    %76 = tpu.memref_slice %arg2[%75, %arg0, %c0_i32_38] : memref<320x2x128xf32, #tpu.memory_space<any>> -> memref<16x1x128xf32, #tpu.memory_space<any>>
    %c112_i32 = arith.constant 112 : i32
    %c0_i32_39 = arith.constant 0 : i32
    %77 = tpu.memref_slice %arg3[%c112_i32, %arg0, %c0_i32_39] : memref<159x2x128xf32, #tpu.memory_space<any>> -> memref<16x1x128xf32, #tpu.memory_space<any>>
    %78 = tpu.memref_slice %arg4[%c7_i32_37] : memref<10x!tpu.dma_semaphore, #tpu.memory_space<semaphore_mem>> -> memref<1x!tpu.dma_semaphore, #tpu.memory_space<semaphore_mem>>
    %79 = tpu.memref_squeeze %78 : memref<1x!tpu.dma_semaphore, #tpu.memory_space<semaphore_mem>> -> memref<!tpu.dma_semaphore, #tpu.memory_space<semaphore_mem>>
    tpu.enqueue_dma source(%76 : memref<16x1x128xf32, #tpu.memory_space<any>>) target(%77 : memref<16x1x128xf32, #tpu.memory_space<any>>) target_semaphore(%79 : memref<!tpu.dma_semaphore, #tpu.memory_space<semaphore_mem>>)
    %c10_i32_40 = arith.constant 10 : i32
    %80 = arith.muli %arg0, %c10_i32_40 : i32
    %c8_i32 = arith.constant 8 : i32
    %81 = arith.addi %80, %c8_i32 : i32
    %82 = arith.index_cast %81 : i32 to index
    %83 = memref.load %arg1[%82] : memref<20xi32, #tpu.memory_space<smem>>
    %c16_i32_41 = arith.constant 16 : i32
    %84 = arith.muli %83, %c16_i32_41 : i32
    %85 = tpu.assume_multiple %84, 16 : i32
    %c8_i32_42 = arith.constant 8 : i32
    %c0_i32_43 = arith.constant 0 : i32
    %86 = tpu.memref_slice %arg2[%85, %arg0, %c0_i32_43] : memref<320x2x128xf32, #tpu.memory_space<any>> -> memref<16x1x128xf32, #tpu.memory_space<any>>
    %c128_i32 = arith.constant 128 : i32
    %c0_i32_44 = arith.constant 0 : i32
    %87 = tpu.memref_slice %arg3[%c128_i32, %arg0, %c0_i32_44] : memref<159x2x128xf32, #tpu.memory_space<any>> -> memref<16x1x128xf32, #tpu.memory_space<any>>
    %88 = tpu.memref_slice %arg4[%c8_i32_42] : memref<10x!tpu.dma_semaphore, #tpu.memory_space<semaphore_mem>> -> memref<1x!tpu.dma_semaphore, #tpu.memory_space<semaphore_mem>>
    %89 = tpu.memref_squeeze %88 : memref<1x!tpu.dma_semaphore, #tpu.memory_space<semaphore_mem>> -> memref<!tpu.dma_semaphore, #tpu.memory_space<semaphore_mem>>
    tpu.enqueue_dma source(%86 : memref<16x1x128xf32, #tpu.memory_space<any>>) target(%87 : memref<16x1x128xf32, #tpu.memory_space<any>>) target_semaphore(%89 : memref<!tpu.dma_semaphore, #tpu.memory_space<semaphore_mem>>)
    %c10_i32_45 = arith.constant 10 : i32
    %90 = arith.muli %arg0, %c10_i32_45 : i32
    %c9_i32 = arith.constant 9 : i32
    %91 = arith.addi %90, %c9_i32 : i32
    %92 = arith.index_cast %91 : i32 to index
    %93 = memref.load %arg1[%92] : memref<20xi32, #tpu.memory_space<smem>>
    %c16_i32_46 = arith.constant 16 : i32
    %94 = arith.muli %93, %c16_i32_46 : i32
    %95 = tpu.assume_multiple %94, 16 : i32
    %c9_i32_47 = arith.constant 9 : i32
    %c0_i32_48 = arith.constant 0 : i32
    %96 = tpu.memref_slice %arg2[%95, %arg0, %c0_i32_48] : memref<320x2x128xf32, #tpu.memory_space<any>> -> memref<15x1x128xf32, #tpu.memory_space<any>>
    %c144_i32 = arith.constant 144 : i32
    %c0_i32_49 = arith.constant 0 : i32
    %97 = tpu.memref_slice %arg3[%c144_i32, %arg0, %c0_i32_49] : memref<159x2x128xf32, #tpu.memory_space<any>> -> memref<15x1x128xf32, #tpu.memory_space<any>>
    %98 = tpu.memref_slice %arg4[%c9_i32_47] : memref<10x!tpu.dma_semaphore, #tpu.memory_space<semaphore_mem>> -> memref<1x!tpu.dma_semaphore, #tpu.memory_space<semaphore_mem>>
    %99 = tpu.memref_squeeze %98 : memref<1x!tpu.dma_semaphore, #tpu.memory_space<semaphore_mem>> -> memref<!tpu.dma_semaphore, #tpu.memory_space<semaphore_mem>>
    tpu.enqueue_dma source(%96 : memref<15x1x128xf32, #tpu.memory_space<any>>) target(%97 : memref<15x1x128xf32, #tpu.memory_space<any>>) target_semaphore(%99 : memref<!tpu.dma_semaphore, #tpu.memory_space<semaphore_mem>>)
    %c0_i32_50 = arith.constant 0 : i32
    %c0_i32_51 = arith.constant 0 : i32
    %100 = tpu.memref_slice %arg2[%5, %arg0, %c0_i32_51] : memref<320x2x128xf32, #tpu.memory_space<any>> -> memref<16x1x128xf32, #tpu.memory_space<any>>
    %c0_i32_52 = arith.constant 0 : i32
    %c0_i32_53 = arith.constant 0 : i32
    %101 = tpu.memref_slice %arg3[%c0_i32_52, %arg0, %c0_i32_53] : memref<159x2x128xf32, #tpu.memory_space<any>> -> memref<16x1x128xf32, #tpu.memory_space<any>>
    %102 = tpu.memref_slice %arg4[%c0_i32_50] : memref<10x!tpu.dma_semaphore, #tpu.memory_space<semaphore_mem>> -> memref<1x!tpu.dma_semaphore, #tpu.memory_space<semaphore_mem>>
    %103 = tpu.memref_squeeze %102 : memref<1x!tpu.dma_semaphore, #tpu.memory_space<semaphore_mem>> -> memref<!tpu.dma_semaphore, #tpu.memory_space<semaphore_mem>>
    tpu.wait_dma2 semaphore(%103 : memref<!tpu.dma_semaphore, #tpu.memory_space<semaphore_mem>>) src(%100 : memref<16x1x128xf32, #tpu.memory_space<any>>) dst(%101 : memref<16x1x128xf32, #tpu.memory_space<any>>)
    %c1_i32_54 = arith.constant 1 : i32
    %c0_i32_55 = arith.constant 0 : i32
    %104 = tpu.memref_slice %arg2[%15, %arg0, %c0_i32_55] : memref<320x2x128xf32, #tpu.memory_space<any>> -> memref<16x1x128xf32, #tpu.memory_space<any>>
    %c16_i32_56 = arith.constant 16 : i32
    %c0_i32_57 = arith.constant 0 : i32
    %105 = tpu.memref_slice %arg3[%c16_i32_56, %arg0, %c0_i32_57] : memref<159x2x128xf32, #tpu.memory_space<any>> -> memref<16x1x128xf32, #tpu.memory_space<any>>
    %106 = tpu.memref_slice %arg4[%c1_i32_54] : memref<10x!tpu.dma_semaphore, #tpu.memory_space<semaphore_mem>> -> memref<1x!tpu.dma_semaphore, #tpu.memory_space<semaphore_mem>>
    %107 = tpu.memref_squeeze %106 : memref<1x!tpu.dma_semaphore, #tpu.memory_space<semaphore_mem>> -> memref<!tpu.dma_semaphore, #tpu.memory_space<semaphore_mem>>
    tpu.wait_dma2 semaphore(%107 : memref<!tpu.dma_semaphore, #tpu.memory_space<semaphore_mem>>) src(%104 : memref<16x1x128xf32, #tpu.memory_space<any>>) dst(%105 : memref<16x1x128xf32, #tpu.memory_space<any>>)
    %c2_i32_58 = arith.constant 2 : i32
    %c0_i32_59 = arith.constant 0 : i32
    %108 = tpu.memref_slice %arg2[%25, %arg0, %c0_i32_59] : memref<320x2x128xf32, #tpu.memory_space<any>> -> memref<16x1x128xf32, #tpu.memory_space<any>>
    %c32_i32_60 = arith.constant 32 : i32
    %c0_i32_61 = arith.constant 0 : i32
    %109 = tpu.memref_slice %arg3[%c32_i32_60, %arg0, %c0_i32_61] : memref<159x2x128xf32, #tpu.memory_space<any>> -> memref<16x1x128xf32, #tpu.memory_space<any>>
    %110 = tpu.memref_slice %arg4[%c2_i32_58] : memref<10x!tpu.dma_semaphore, #tpu.memory_space<semaphore_mem>> -> memref<1x!tpu.dma_semaphore, #tpu.memory_space<semaphore_mem>>
    %111 = tpu.memref_squeeze %110 : memref<1x!tpu.dma_semaphore, #tpu.memory_space<semaphore_mem>> -> memref<!tpu.dma_semaphore, #tpu.memory_space<semaphore_mem>>
    tpu.wait_dma2 semaphore(%111 : memref<!tpu.dma_semaphore, #tpu.memory_space<semaphore_mem>>) src(%108 : memref<16x1x128xf32, #tpu.memory_space<any>>) dst(%109 : memref<16x1x128xf32, #tpu.memory_space<any>>)
    %c3_i32_62 = arith.constant 3 : i32
    %c0_i32_63 = arith.constant 0 : i32
    %112 = tpu.memref_slice %arg2[%35, %arg0, %c0_i32_63] : memref<320x2x128xf32, #tpu.memory_space<any>> -> memref<16x1x128xf32, #tpu.memory_space<any>>
    %c48_i32_64 = arith.constant 48 : i32
    %c0_i32_65 = arith.constant 0 : i32
    %113 = tpu.memref_slice %arg3[%c48_i32_64, %arg0, %c0_i32_65] : memref<159x2x128xf32, #tpu.memory_space<any>> -> memref<16x1x128xf32, #tpu.memory_space<any>>
    %114 = tpu.memref_slice %arg4[%c3_i32_62] : memref<10x!tpu.dma_semaphore, #tpu.memory_space<semaphore_mem>> -> memref<1x!tpu.dma_semaphore, #tpu.memory_space<semaphore_mem>>
    %115 = tpu.memref_squeeze %114 : memref<1x!tpu.dma_semaphore, #tpu.memory_space<semaphore_mem>> -> memref<!tpu.dma_semaphore, #tpu.memory_space<semaphore_mem>>
    tpu.wait_dma2 semaphore(%115 : memref<!tpu.dma_semaphore, #tpu.memory_space<semaphore_mem>>) src(%112 : memref<16x1x128xf32, #tpu.memory_space<any>>) dst(%113 : memref<16x1x128xf32, #tpu.memory_space<any>>)
    %c4_i32_66 = arith.constant 4 : i32
    %c0_i32_67 = arith.constant 0 : i32
    %116 = tpu.memref_slice %arg2[%45, %arg0, %c0_i32_67] : memref<320x2x128xf32, #tpu.memory_space<any>> -> memref<16x1x128xf32, #tpu.memory_space<any>>
    %c64_i32_68 = arith.constant 64 : i32
    %c0_i32_69 = arith.constant 0 : i32
    %117 = tpu.memref_slice %arg3[%c64_i32_68, %arg0, %c0_i32_69] : memref<159x2x128xf32, #tpu.memory_space<any>> -> memref<16x1x128xf32, #tpu.memory_space<any>>
    %118 = tpu.memref_slice %arg4[%c4_i32_66] : memref<10x!tpu.dma_semaphore, #tpu.memory_space<semaphore_mem>> -> memref<1x!tpu.dma_semaphore, #tpu.memory_space<semaphore_mem>>
    %119 = tpu.memref_squeeze %118 : memref<1x!tpu.dma_semaphore, #tpu.memory_space<semaphore_mem>> -> memref<!tpu.dma_semaphore, #tpu.memory_space<semaphore_mem>>
    tpu.wait_dma2 semaphore(%119 : memref<!tpu.dma_semaphore, #tpu.memory_space<semaphore_mem>>) src(%116 : memref<16x1x128xf32, #tpu.memory_space<any>>) dst(%117 : memref<16x1x128xf32, #tpu.memory_space<any>>)
    %c5_i32_70 = arith.constant 5 : i32
    %c0_i32_71 = arith.constant 0 : i32
    %120 = tpu.memref_slice %arg2[%55, %arg0, %c0_i32_71] : memref<320x2x128xf32, #tpu.memory_space<any>> -> memref<16x1x128xf32, #tpu.memory_space<any>>
    %c80_i32_72 = arith.constant 80 : i32
    %c0_i32_73 = arith.constant 0 : i32
    %121 = tpu.memref_slice %arg3[%c80_i32_72, %arg0, %c0_i32_73] : memref<159x2x128xf32, #tpu.memory_space<any>> -> memref<16x1x128xf32, #tpu.memory_space<any>>
    %122 = tpu.memref_slice %arg4[%c5_i32_70] : memref<10x!tpu.dma_semaphore, #tpu.memory_space<semaphore_mem>> -> memref<1x!tpu.dma_semaphore, #tpu.memory_space<semaphore_mem>>
    %123 = tpu.memref_squeeze %122 : memref<1x!tpu.dma_semaphore, #tpu.memory_space<semaphore_mem>> -> memref<!tpu.dma_semaphore, #tpu.memory_space<semaphore_mem>>
    tpu.wait_dma2 semaphore(%123 : memref<!tpu.dma_semaphore, #tpu.memory_space<semaphore_mem>>) src(%120 : memref<16x1x128xf32, #tpu.memory_space<any>>) dst(%121 : memref<16x1x128xf32, #tpu.memory_space<any>>)
    %c6_i32_74 = arith.constant 6 : i32
    %c0_i32_75 = arith.constant 0 : i32
    %124 = tpu.memref_slice %arg2[%65, %arg0, %c0_i32_75] : memref<320x2x128xf32, #tpu.memory_space<any>> -> memref<16x1x128xf32, #tpu.memory_space<any>>
    %c96_i32_76 = arith.constant 96 : i32
    %c0_i32_77 = arith.constant 0 : i32
    %125 = tpu.memref_slice %arg3[%c96_i32_76, %arg0, %c0_i32_77] : memref<159x2x128xf32, #tpu.memory_space<any>> -> memref<16x1x128xf32, #tpu.memory_space<any>>
    %126 = tpu.memref_slice %arg4[%c6_i32_74] : memref<10x!tpu.dma_semaphore, #tpu.memory_space<semaphore_mem>> -> memref<1x!tpu.dma_semaphore, #tpu.memory_space<semaphore_mem>>
    %127 = tpu.memref_squeeze %126 : memref<1x!tpu.dma_semaphore, #tpu.memory_space<semaphore_mem>> -> memref<!tpu.dma_semaphore, #tpu.memory_space<semaphore_mem>>
    tpu.wait_dma2 semaphore(%127 : memref<!tpu.dma_semaphore, #tpu.memory_space<semaphore_mem>>) src(%124 : memref<16x1x128xf32, #tpu.memory_space<any>>) dst(%125 : memref<16x1x128xf32, #tpu.memory_space<any>>)
    %c7_i32_78 = arith.constant 7 : i32
    %c0_i32_79 = arith.constant 0 : i32
    %128 = tpu.memref_slice %arg2[%75, %arg0, %c0_i32_79] : memref<320x2x128xf32, #tpu.memory_space<any>> -> memref<16x1x128xf32, #tpu.memory_space<any>>
    %c112_i32_80 = arith.constant 112 : i32
    %c0_i32_81 = arith.constant 0 : i32
    %129 = tpu.memref_slice %arg3[%c112_i32_80, %arg0, %c0_i32_81] : memref<159x2x128xf32, #tpu.memory_space<any>> -> memref<16x1x128xf32, #tpu.memory_space<any>>
    %130 = tpu.memref_slice %arg4[%c7_i32_78] : memref<10x!tpu.dma_semaphore, #tpu.memory_space<semaphore_mem>> -> memref<1x!tpu.dma_semaphore, #tpu.memory_space<semaphore_mem>>
    %131 = tpu.memref_squeeze %130 : memref<1x!tpu.dma_semaphore, #tpu.memory_space<semaphore_mem>> -> memref<!tpu.dma_semaphore, #tpu.memory_space<semaphore_mem>>
    tpu.wait_dma2 semaphore(%131 : memref<!tpu.dma_semaphore, #tpu.memory_space<semaphore_mem>>) src(%128 : memref<16x1x128xf32, #tpu.memory_space<any>>) dst(%129 : memref<16x1x128xf32, #tpu.memory_space<any>>)
    %c8_i32_82 = arith.constant 8 : i32
    %c0_i32_83 = arith.constant 0 : i32
    %132 = tpu.memref_slice %arg2[%85, %arg0, %c0_i32_83] : memref<320x2x128xf32, #tpu.memory_space<any>> -> memref<16x1x128xf32, #tpu.memory_space<any>>
    %c128_i32_84 = arith.constant 128 : i32
    %c0_i32_85 = arith.constant 0 : i32
    %133 = tpu.memref_slice %arg3[%c128_i32_84, %arg0, %c0_i32_85] : memref<159x2x128xf32, #tpu.memory_space<any>> -> memref<16x1x128xf32, #tpu.memory_space<any>>
    %134 = tpu.memref_slice %arg4[%c8_i32_82] : memref<10x!tpu.dma_semaphore, #tpu.memory_space<semaphore_mem>> -> memref<1x!tpu.dma_semaphore, #tpu.memory_space<semaphore_mem>>
    %135 = tpu.memref_squeeze %134 : memref<1x!tpu.dma_semaphore, #tpu.memory_space<semaphore_mem>> -> memref<!tpu.dma_semaphore, #tpu.memory_space<semaphore_mem>>
    tpu.wait_dma2 semaphore(%135 : memref<!tpu.dma_semaphore, #tpu.memory_space<semaphore_mem>>) src(%132 : memref<16x1x128xf32, #tpu.memory_space<any>>) dst(%133 : memref<16x1x128xf32, #tpu.memory_space<any>>)
    %c9_i32_86 = arith.constant 9 : i32
    %c0_i32_87 = arith.constant 0 : i32
    %136 = tpu.memref_slice %arg2[%95, %arg0, %c0_i32_87] : memref<320x2x128xf32, #tpu.memory_space<any>> -> memref<15x1x128xf32, #tpu.memory_space<any>>
    %c144_i32_88 = arith.constant 144 : i32
    %c0_i32_89 = arith.constant 0 : i32
    %137 = tpu.memref_slice %arg3[%c144_i32_88, %arg0, %c0_i32_89] : memref<159x2x128xf32, #tpu.memory_space<any>> -> memref<15x1x128xf32, #tpu.memory_space<any>>
    %138 = tpu.memref_slice %arg4[%c9_i32_86] : memref<10x!tpu.dma_semaphore, #tpu.memory_space<semaphore_mem>> -> memref<1x!tpu.dma_semaphore, #tpu.memory_space<semaphore_mem>>
    %139 = tpu.memref_squeeze %138 : memref<1x!tpu.dma_semaphore, #tpu.memory_space<semaphore_mem>> -> memref<!tpu.dma_semaphore, #tpu.memory_space<semaphore_mem>>
    tpu.wait_dma2 semaphore(%139 : memref<!tpu.dma_semaphore, #tpu.memory_space<semaphore_mem>>) src(%136 : memref<15x1x128xf32, #tpu.memory_space<any>>) dst(%137 : memref<15x1x128xf32, #tpu.memory_space<any>>)
    return
  }
}

</mosaic_0001>

<llo_original>
// kernel: tpu_custom_call.1
$region0: #{tpu_custom_call.1}
  #allocation0 [shape = 'u32[]', space=smem, size = 0x4, offset = 0x4, fixed_abs, tag = 'smem constant byte address 0x4 - core index']
  #allocation1 [shape = 'u32[144,128]{1,0:T(1,128)}', space=vmem, size = 0x12000, scoped, tag = 'internal scratch']
  #allocation2 [shape = 's32[10]{0}', space=sflag, size = 0x28, scoped, tag = 'scratch operand']
  #allocation3 [shape = 's32[1]{0}', space=sflag, size = 0x4, scoped, tag = 'scoped memory for tpu_custom_call.1']
  #allocation4 [shape = 'u8[512]{0}', space=smem, size = 0x200, scoped, tag = 'prefetched SMEM operand 0']
  #allocation5 [shape = 's32[]', space=sflag, size = 0x4, offset = 0, fixed_abs, tag = 'sflag constant byte address 0x0 - dummy sync flag']
  #allocation7 [shape = 's32[]', space=sflag, size = 0x4, offset = 0, fixed_abs, tag = 'sflag constant byte address 0x0 - dummy sync flag']
  #allocation9 [shape = 's32[]', space=sflag, size = 0x4, offset = 0, fixed_abs, tag = 'sflag constant byte address 0x0 - dummy sync flag']
  #allocation11 [shape = 's32[]', space=sflag, size = 0x4, offset = 0, fixed_abs, tag = 'sflag constant byte address 0x0 - dummy sync flag']
  #allocation13 [shape = 's32[]', space=sflag, size = 0x4, offset = 0, fixed_abs, tag = 'sflag constant byte address 0x0 - dummy sync flag']
  #allocation15 [shape = 's32[]', space=sflag, size = 0x4, offset = 0, fixed_abs, tag = 'sflag constant byte address 0x0 - dummy sync flag']
  #allocation17 [shape = 's32[]', space=sflag, size = 0x4, offset = 0, fixed_abs, tag = 'sflag constant byte address 0x0 - dummy sync flag']
  #allocation19 [shape = 's32[]', space=sflag, size = 0x4, offset = 0, fixed_abs, tag = 'sflag constant byte address 0x0 - dummy sync flag']
  #allocation21 [shape = 's32[]', space=sflag, size = 0x4, offset = 0, fixed_abs, tag = 'sflag constant byte address 0x0 - dummy sync flag']
  #allocation23 [shape = 's32[]', space=sflag, size = 0x4, offset = 0, fixed_abs, tag = 'sflag constant byte address 0x0 - dummy sync flag']
  %s0 = inlined_call_operand.hbm [shape: s32[20], index: 0, kind: input, shape index: {}]
  %s1 = inlined_call_operand.hbm [shape: f32[320,2,128], index: 1, kind: input, shape index: {}]
  %s2 = inlined_call_operand.hbm [shape: f32[159,2,128], index: 2, kind: output, shape index: {}]
  %s3 = sld [smem:[#allocation0]]
  $region9: #{tpu_custom_call.1} parent=0
    _
  %s5 = ssub.s32 1, %s3
  %s6 = scalar_select 0, %s5, %s3
  %8 = dma.hbm_to_smem %s0, 16, [#allocation4], [#allocation3]
  %9 = dma.done [#allocation3], 16
  %10 = sfence
  loop: start=0, step=1, limit=2
  $region2: #{tpu_custom_call.1} parent=0 // loop_pre_header
    _
  $region3: #{tpu_custom_call.1} parent=0 // loop_header
    %s12 = sphi 0, %s16
    %p13 = scmp.ge.s32.totalorder %s12, 2
  $region4: #{tpu_custom_call.1} parent=0 // loop_header_branch
    %15 = sbr.rel (%p13) target = $region8
  $region5: #{tpu_custom_call.1} parent=0 // loop_body
    #allocation6 [shape = 'u32[3]{0}', space=smem, size = 0xc, scoped, tag = 'DMA stride descriptor']
    #allocation8 [shape = 'u32[3]{0}', space=smem, size = 0xc, scoped, tag = 'DMA stride descriptor']
    #allocation10 [shape = 'u32[3]{0}', space=smem, size = 0xc, scoped, tag = 'DMA stride descriptor']
    #allocation12 [shape = 'u32[3]{0}', space=smem, size = 0xc, scoped, tag = 'DMA stride descriptor']
    #allocation14 [shape = 'u32[3]{0}', space=smem, size = 0xc, scoped, tag = 'DMA stride descriptor']
    #allocation16 [shape = 'u32[3]{0}', space=smem, size = 0xc, scoped, tag = 'DMA stride descriptor']
    #allocation18 [shape = 'u32[3]{0}', space=smem, size = 0xc, scoped, tag = 'DMA stride descriptor']
    #allocation20 [shape = 'u32[3]{0}', space=smem, size = 0xc, scoped, tag = 'DMA stride descriptor']
    #allocation22 [shape = 'u32[3]{0}', space=smem, size = 0xc, scoped, tag = 'DMA stride descriptor']
    #allocation24 [shape = 'u32[3]{0}', space=smem, size = 0xc, scoped, tag = 'DMA stride descriptor']
    %s17 = sadd.s32 %s12, 1
    %s18 = smul.u32 %s12, 10
    %s19 = sld [smem:[#allocation4 + %s18]]
    %s20 = smul.u32 %s19, 16
    %s21 = smul.u32 %s20, 2
    %s22 = sadd.s32 %s12, %s21
    %s23 = smul.addr %s22, 16
    %s24 = scalar_lea.hbm %s1, %s23
    %s25 = smul.addr %s12, 16
    %s26 = scalar_lea.hbm %s2, %s25
    %s28 = sshll.u32 1, 14
    %s29 = sxor.u32 4294967295, %s28
    %33 = sst [smem:[#allocation6]] 32
    %s34 = scalar_lea.smem [#allocation6], 1
    %35 = sst [smem:[%s34]] 32
    %s36 = scalar_lea.smem [#allocation6], 2
    %37 = sst [smem:[%s36]] 1
    %39 = dma.general %s24, 256, %s26, [#allocation2], 131072, [#allocation6], 0, 0
    %s40 = sadd.s32 %s18, 1
    %s41 = sld [smem:[#allocation4 + %s40]]
    %s42 = smul.u32 %s41, 16
    %s43 = smul.u32 %s42, 2
    %s44 = sadd.s32 %s12, %s43
    %s45 = smul.addr %s44, 16
    %s46 = scalar_lea.hbm %s1, %s45
    %s47 = sadd.s32 %s12, 32
    %s48 = smul.addr %s47, 16
    %s49 = scalar_lea.hbm %s2, %s48
    %s50 = scalar_lea.sflag [#allocation2], 1
    %s52 = sshll.u32 1, 14
    %s53 = sxor.u32 4294967295, %s52
    %57 = sst [smem:[#allocation8]] 32
    %s58 = scalar_lea.smem [#allocation8], 1
    %59 = sst [smem:[%s58]] 32
    %s60 = scalar_lea.smem [#allocation8], 2
    %61 = sst [smem:[%s60]] 1
    %63 = dma.general %s46, 256, %s49, %s50, 131072, [#allocation8], 0, 0
    %s64 = sadd.s32 %s18, 2
    %s65 = sld [smem:[#allocation4 + %s64]]
    %s66 = smul.u32 %s65, 16
    %s67 = smul.u32 %s66, 2
    %s68 = sadd.s32 %s12, %s67
    %s69 = smul.addr %s68, 16
    %s70 = scalar_lea.hbm %s1, %s69
    %s71 = sadd.s32 %s12, 64
    %s72 = smul.addr %s71, 16
    %s73 = scalar_lea.hbm %s2, %s72
    %s74 = scalar_lea.sflag [#allocation2], 2
    %s76 = sshll.u32 1, 14
    %s77 = sxor.u32 4294967295, %s76
    %81 = sst [smem:[#allocation10]] 32
    %s82 = scalar_lea.smem [#allocation10], 1
    %83 = sst [smem:[%s82]] 32
    %s84 = scalar_lea.smem [#allocation10], 2
    %85 = sst [smem:[%s84]] 1
    %87 = dma.general %s70, 256, %s73, %s74, 131072, [#allocation10], 0, 0
    %s88 = sadd.s32 %s18, 3
    %s89 = sld [smem:[#allocation4 + %s88]]
    %s90 = smul.u32 %s89, 16
    %s91 = smul.u32 %s90, 2
    %s92 = sadd.s32 %s12, %s91
    %s93 = smul.addr %s92, 16
    %s94 = scalar_lea.hbm %s1, %s93
    %s95 = sadd.s32 %s12, 96
    %s96 = smul.addr %s95, 16
    %s97 = scalar_lea.hbm %s2, %s96
    %s98 = scalar_lea.sflag [#allocation2], 3
    %s100 = sshll.u32 1, 14
    %s101 = sxor.u32 4294967295, %s100
    %105 = sst [smem:[#allocation12]] 32
    %s106 = scalar_lea.smem [#allocation12], 1
    %107 = sst [smem:[%s106]] 32
    %s108 = scalar_lea.smem [#allocation12], 2
    %109 = sst [smem:[%s108]] 1
    %111 = dma.general %s94, 256, %s97, %s98, 131072, [#allocation12], 0, 0
    %s112 = sadd.s32 %s18, 4
    %s113 = sld [smem:[#allocation4 + %s112]]
    %s114 = smul.u32 %s113, 16
    %s115 = smul.u32 %s114, 2
    %s116 = sadd.s32 %s12, %s115
    %s117 = smul.addr %s116, 16
    %s118 = scalar_lea.hbm %s1, %s117
    %s119 = sadd.s32 %s12, 128
    %s120 = smul.addr %s119, 16
    %s121 = scalar_lea.hbm %s2, %s120
    %s122 = scalar_lea.sflag [#allocation2], 4
    %s124 = sshll.u32 1, 14
    %s125 = sxor.u32 4294967295, %s124
    %129 = sst [smem:[#allocation14]] 32
    %s130 = scalar_lea.smem [#allocation14], 1
    %131 = sst [smem:[%s130]] 32
    %s132 = scalar_lea.smem [#allocation14], 2
    %133 = sst [smem:[%s132]] 1
    %135 = dma.general %s118, 256, %s121, %s122, 131072, [#allocation14], 0, 0
    %s136 = sadd.s32 %s18, 5
    %s137 = sld [smem:[#allocation4 + %s136]]
    %s138 = smul.u32 %s137, 16
    %s139 = smul.u32 %s138, 2
    %s140 = sadd.s32 %s12, %s139
    %s141 = smul.addr %s140, 16
    %s142 = scalar_lea.hbm %s1, %s141
    %s143 = sadd.s32 %s12, 160
    %s144 = smul.addr %s143, 16
    %s145 = scalar_lea.hbm %s2, %s144
    %s146 = scalar_lea.sflag [#allocation2], 5
    %s148 = sshll.u32 1, 14
    %s149 = sxor.u32 4294967295, %s148
    %153 = sst [smem:[#allocation16]] 32
    %s154 = scalar_lea.smem [#allocation16], 1
    %155 = sst [smem:[%s154]] 32
    %s156 = scalar_lea.smem [#allocation16], 2
    %157 = sst [smem:[%s156]] 1
    %159 = dma.general %s142, 256, %s145, %s146, 131072, [#allocation16], 0, 0
    %s160 = sadd.s32 %s18, 6
    %s161 = sld [smem:[#allocation4 + %s160]]
    %s162 = smul.u32 %s161, 16
    %s163 = smul.u32 %s162, 2
    %s164 = sadd.s32 %s12, %s163
    %s165 = smul.addr %s164, 16
    %s166 = scalar_lea.hbm %s1, %s165
    %s167 = sadd.s32 %s12, 192
    %s168 = smul.addr %s167, 16
    %s169 = scalar_lea.hbm %s2, %s168
    %s170 = scalar_lea.sflag [#allocation2], 6
    %s172 = sshll.u32 1, 14
    %s173 = sxor.u32 4294967295, %s172
    %177 = sst [smem:[#allocation18]] 32
    %s178 = scalar_lea.smem [#allocation18], 1
    %179 = sst [smem:[%s178]] 32
    %s180 = scalar_lea.smem [#allocation18], 2
    %181 = sst [smem:[%s180]] 1
    %183 = dma.general %s166, 256, %s169, %s170, 131072, [#allocation18], 0, 0
    %s184 = sadd.s32 %s18, 7
    %s185 = sld [smem:[#allocation4 + %s184]]
    %s186 = smul.u32 %s185, 16
    %s187 = smul.u32 %s186, 2
    %s188 = sadd.s32 %s12, %s187
    %s189 = smul.addr %s188, 16
    %s190 = scalar_lea.hbm %s1, %s189
    %s191 = sadd.s32 %s12, 224
    %s192 = smul.addr %s191, 16
    %s193 = scalar_lea.hbm %s2, %s192
    %s194 = scalar_lea.sflag [#allocation2], 7
    %s196 = sshll.u32 1, 14
    %s197 = sxor.u32 4294967295, %s196
    %201 = sst [smem:[#allocation20]] 32
    %s202 = scalar_lea.smem [#allocation20], 1
    %203 = sst [smem:[%s202]] 32
    %s204 = scalar_lea.smem [#allocation20], 2
    %205 = sst [smem:[%s204]] 1
    %207 = dma.general %s190, 256, %s193, %s194, 131072, [#allocation20], 0, 0
    %s208 = sadd.s32 %s18, 8
    %s209 = sld [smem:[#allocation4 + %s208]]
    %s210 = smul.u32 %s209, 16
    %s211 = smul.u32 %s210, 2
    %s212 = sadd.s32 %s12, %s211
    %s213 = smul.addr %s212, 16
    %s214 = scalar_lea.hbm %s1, %s213
    %s215 = sadd.s32 %s12, 256
    %s216 = smul.addr %s215, 16
    %s217 = scalar_lea.hbm %s2, %s216
    %s218 = scalar_lea.sflag [#allocation2], 8
    %s220 = sshll.u32 1, 14
    %s221 = sxor.u32 4294967295, %s220
    %225 = sst [smem:[#allocation22]] 32
    %s226 = scalar_lea.smem [#allocation22], 1
    %227 = sst [smem:[%s226]] 32
    %s228 = scalar_lea.smem [#allocation22], 2
    %229 = sst [smem:[%s228]] 1
    %231 = dma.general %s214, 256, %s217, %s218, 131072, [#allocation22], 0, 0
    %s232 = sadd.s32 %s18, 9
    %s233 = sld [smem:[#allocation4 + %s232]]
    %s234 = smul.u32 %s233, 16
    %s235 = smul.u32 %s234, 2
    %s236 = sadd.s32 %s12, %s235
    %s237 = smul.addr %s236, 16
    %s238 = scalar_lea.hbm %s1, %s237
    %s239 = sadd.s32 %s12, 288
    %s240 = smul.addr %s239, 16
    %s241 = scalar_lea.hbm %s2, %s240
    %s242 = scalar_lea.sflag [#allocation2], 9
    %s244 = sshll.u32 1, 14
    %s245 = sxor.u32 4294967295, %s244
    %249 = sst [smem:[#allocation24]] 32
    %s250 = scalar_lea.smem [#allocation24], 1
    %251 = sst [smem:[%s250]] 32
    %s252 = scalar_lea.smem [#allocation24], 2
    %253 = sst [smem:[%s252]] 1
    %255 = dma.general %s238, 240, %s241, %s242, 131072, [#allocation24], 0, 0
    %s256 = smul.u32 16, 1
    %s257 = smul.u32 %s256, 1
    %s258 = sshll.u32 %s257, 4
    %259 = dma.done [#allocation2], %s258
    %s260 = sshll.u32 %s257, 4
    %261 = dma.done %s50, %s260
    %s262 = sshll.u32 %s257, 4
    %263 = dma.done %s74, %s262
    %s264 = sshll.u32 %s257, 4
    %265 = dma.done %s98, %s264
    %s266 = sshll.u32 %s257, 4
    %267 = dma.done %s122, %s266
    %s268 = sshll.u32 %s257, 4
    %269 = dma.done %s146, %s268
    %s270 = sshll.u32 %s257, 4
    %271 = dma.done %s170, %s270
    %s272 = sshll.u32 %s257, 4
    %273 = dma.done %s194, %s272
    %s274 = sshll.u32 %s257, 4
    %275 = dma.done %s218, %s274
    %s276 = smul.u32 15, 1
    %s277 = smul.u32 %s276, 1
    %s278 = sshll.u32 %s277, 4
    %279 = dma.done %s242, %s278
  $region6: #{tpu_custom_call.1} parent=0 // loop_footer
    %s16 = sadd.s32 1, %s12
  $region7: #{tpu_custom_call.1} parent=0 // loop_footer_branch
    %11 = sbr.rel target = $region3
  $region8: #{tpu_custom_call.1} parent=0 // loop_exit
    _
  %280 = vsyncmov [#allocation2]
  %s281 = vpop.sfrf %280
  %p282 = scmp.eq.s32.totalorder %s281, 0
  %p283 = pneg %p282
  %285 = shalt.err (%p283)
  %s286 = scalar_lea.sflag [#allocation2], 1
  %287 = vsyncmov %s286
  %s288 = vpop.sfrf %287
  %p289 = scmp.eq.s32.totalorder %s288, 0
  %p290 = pneg %p289
  %292 = shalt.err (%p290)
  %s293 = scalar_lea.sflag [#allocation2], 2
  %294 = vsyncmov %s293
  %s295 = vpop.sfrf %294
  %p296 = scmp.eq.s32.totalorder %s295, 0
  %p297 = pneg %p296
  %299 = shalt.err (%p297)
  %s300 = scalar_lea.sflag [#allocation2], 3
  %301 = vsyncmov %s300
  %s302 = vpop.sfrf %301
  %p303 = scmp.eq.s32.totalorder %s302, 0
  %p304 = pneg %p303
  %306 = shalt.err (%p304)
  %s307 = scalar_lea.sflag [#allocation2], 4
  %308 = vsyncmov %s307
  %s309 = vpop.sfrf %308
  %p310 = scmp.eq.s32.totalorder %s309, 0
  %p311 = pneg %p310
  %313 = shalt.err (%p311)
  %s314 = scalar_lea.sflag [#allocation2], 5
  %315 = vsyncmov %s314
  %s316 = vpop.sfrf %315
  %p317 = scmp.eq.s32.totalorder %s316, 0
  %p318 = pneg %p317
  %320 = shalt.err (%p318)
  %s321 = scalar_lea.sflag [#allocation2], 6
  %322 = vsyncmov %s321
  %s323 = vpop.sfrf %322
  %p324 = scmp.eq.s32.totalorder %s323, 0
  %p325 = pneg %p324
  %327 = shalt.err (%p325)
  %s328 = scalar_lea.sflag [#allocation2], 7
  %329 = vsyncmov %s328
  %s330 = vpop.sfrf %329
  %p331 = scmp.eq.s32.totalorder %s330, 0
  %p332 = pneg %p331
  %334 = shalt.err (%p332)
  %s335 = scalar_lea.sflag [#allocation2], 8
  %336 = vsyncmov %s335
  %s337 = vpop.sfrf %336
  %p338 = scmp.eq.s32.totalorder %s337, 0
  %p339 = pneg %p338
  %341 = shalt.err (%p339)
  %s342 = scalar_lea.sflag [#allocation2], 9
  %343 = vsyncmov %s342
  %s344 = vpop.sfrf %343
  %p345 = scmp.eq.s32.totalorder %s344, 0
  %p346 = pneg %p345
  %348 = shalt.err (%p346)

</llo_original>
